<compile_context>
chip_gen: v7x
topology: tpu7x:2x2x1
jax: 0.10.0
libtpu: 0.0.40
codegen_flags: <defaults>
</compile_context>

<pallas_src>
import jax
import jax.numpy as jnp
import numpy as np
from jax.experimental import pallas as pl
from jax.experimental.pallas import tpu as pltpu


def _sc_att_kernel(xa_ref, wcat_ref, out_ref):
    # xa_ref:  (B, CS, HW)   rows follow PyTorch's .view order (c major, s minor)
    # wcat_ref:(CS, 2*CS)    [kron(wq, I_s).T | kron(wk, I_s).T]
    # out_ref: (B, CS, CS)
    cs = wcat_ref.shape[0]

    x = xa_ref[...].astype(jnp.float32)                       # (B, CS, HW)

    # avg_pool + max_pool over (h, w): lane-direction reduce over the whole block at once.
    pooled = jnp.mean(x, axis=2) + jnp.max(x, axis=2)         # (B, CS)

    # Fused query+key channel mix: one MXU matmul for the whole batch block.
    qk = jnp.dot(pooled, wcat_ref[...],
                 preferred_element_type=jnp.float32)          # (B, 2*CS)
    q = qk[:, :cs]                                            # (B, CS)
    k = qk[:, cs:]                                            # (B, CS)

    # energy = bmm(q, k^T): inner dim is 1, i.e. a batched outer product.
    energy = q[:, :, None] * k[:, None, :]                    # (B, CS, CS)

    # softmax over the last dim (dropout p=0.0 is the identity; gamma unused in forward).
    e_max = jnp.max(energy, axis=-1, keepdims=True)
    p = jnp.exp(energy - e_max)
    denom = jnp.sum(p, axis=-1, keepdims=True)
    out_ref[...] = (p / denom).astype(out_ref.dtype)


def _vmem_physical_bytes():
    """Physical VMEM of the current chip (64 MiB/TC on v7x, 128 MiB on v5e/v6e)."""
    try:
        info = pltpu.get_tpu_info()
        v = getattr(info, "vmem_capacity_bytes", None)
        if v:
            return int(v)
    except Exception:
        pass
    return 64 * 1024 * 1024  # conservative fallback (v7x per-TC)


def _pick_batch_block(n, cs, hw, itemsize, vmem_physical,
                      min_grid_steps=2, max_input_block_bytes=16 << 20):
    """Batch entries per grid step: big enough to hide the ~0.35us step overhead,
    small enough to fit (double-buffered) in VMEM and to leave >= 2 grid steps."""
    per_batch_x = cs * hw * itemsize
    per_batch_out = cs * cs * itemsize
    # double-buffered x + double-buffered out + ~3 f32 (CS,CS) intermediates per batch row
    per_batch_vmem = 2 * per_batch_x + 2 * per_batch_out + 3 * cs * cs * 4
    vmem_budget = vmem_physical // 2                     # headroom for weights/code/spills
    bb = max(1, min(max_input_block_bytes // max(per_batch_x, 1),
                    vmem_budget // max(per_batch_vmem, 1)))
    if n >= min_grid_steps:
        # Keep >= 2 grid steps so megacore / v7x's 2 TensorCores both get work.
        bb = min(bb, pl.cdiv(n, min_grid_steps))
    return max(1, min(bb, n))


def sc_att_gen_pallas(x, wq, wk, *, batch_block=None, x_in_bf16=False):
    """x: (n, c, s, h, w) float32; wq, wk: (c, c) SESConv_H_H_1x1 weights (no bias)."""
    n, c, s, h, w = x.shape
    cs, hw = c * s, h * w
    out_dtype = x.dtype

    # Free reshape (no HBM copy): rows are the flattened (c, s) axis in PyTorch .view order.
    xa = x.reshape(n, cs, hw)
    if x_in_bf16:
        # Halves the HBM read of x (the binding cost); kernel upcasts before pooling.
        xa = xa.astype(jnp.bfloat16)
    itemsize = xa.dtype.itemsize

    # Fused channel-mix weight acting on the flat (c*s) axis:
    #   q = pooled @ kron(wq, I_s).T ; k = pooled @ kron(wk, I_s).T
    # NOTE: scales as (c*s)^2; fine at small c (8 KiB here).  For large c, use the native
    # (c, 2c) mix on a (B, s, c)-shaped pooled tensor and precompute/cache this weight.
    eye_s = jnp.eye(s, dtype=jnp.float32)
    w_cat = jnp.concatenate(
        [jnp.kron(wq.astype(jnp.float32), eye_s).T,
         jnp.kron(wk.astype(jnp.float32), eye_s).T], axis=1)          # (CS, 2*CS)

    vmem_physical = _vmem_physical_bytes()
    if batch_block is None:
        batch_block = _pick_batch_block(n, cs, hw, itemsize, vmem_physical)

    # Pad n up to a multiple of batch_block (zero rows -> finite uniform softmax, discarded).
    n_grid = pl.cdiv(n, batch_block)
    n_pad = n_grid * batch_block
    if n_pad != n:
        xa = jnp.pad(xa, ((0, n_pad - n), (0, 0), (0, 0)))

    # Explicit scoped-VMEM limit so large blocks aren't rejected by the default (16/32 MiB).
    vmem_needed = (2 * batch_block * cs * hw * itemsize      # x, double-buffered
                   + 2 * batch_block * cs * cs * 4           # out, double-buffered
                   + 3 * batch_block * cs * cs * 4           # softmax intermediates
                   + 2 * cs * (2 * cs) * 4                   # fused weight
                   + (2 << 20))                              # slack
    vmem_limit = int(min(max(vmem_needed, 32 << 20), int(vmem_physical * 0.9)))

    out = pl.pallas_call(
        _sc_att_kernel,
        out_shape=jax.ShapeDtypeStruct((n_pad, cs, cs), out_dtype),
        grid_spec=pltpu.PrefetchScalarGridSpec(
            num_scalar_prefetch=0,
            grid=(n_grid,),
            in_specs=[
                pl.BlockSpec((batch_block, cs, hw), lambda i: (i, 0, 0)),
                pl.BlockSpec((cs, 2 * cs), lambda i: (0, 0)),
            ],
            out_specs=pl.BlockSpec((batch_block, cs, cs), lambda i: (i, 0, 0)),
        ),
        compiler_params=pltpu.CompilerParams(
            dimension_semantics=("parallel",),
            vmem_limit_bytes=vmem_limit),
    )(xa, w_cat)

    return out[:n] if n_pad != n else out


def sc_att_gen_reference(x, wq, wk):
    """Pure-JAX reference mirroring the PyTorch forward."""
    n, c, s, _, _ = x.shape
    pooled = jnp.mean(x, axis=(3, 4)) + jnp.max(x, axis=(3, 4))      # (n, c, s)
    q = jnp.einsum('oi,nis->nos', wq, pooled).reshape(n, c * s)      # (n, c*s)
    k = jnp.einsum('oi,nis->nos', wk, pooled).reshape(n, c * s)
    energy = q[:, :, None] * k[:, None, :]                           # (n, c*s, c*s)
    return jax.nn.softmax(energy, axis=-1)


if __name__ == "__main__":
    # Small shapes consistent with the module's 5-D (n, c, s, h, w) input.
    n, c, s, h, w = 2, 4, 8, 16, 16
    key = jax.random.PRNGKey(0)
    kx, kq, kk = jax.random.split(key, 3)

    x = jax.random.normal(kx, (n, c, s, h, w), dtype=jnp.float32)
    # Deterministic synthetic SESConv_H_H_1x1 weights (shape (c, c), bias=False).
    # TODO(synk): gamma parameter exists in __init__ but is unused in forward; dropout p=0.0 is
    # the identity; SESConv_H_H_1x1 is treated as a bias-free per-scale-shared (c,c) 1x1 mix.
    bound = 1.0 / np.sqrt(c)
    wq = jax.random.uniform(kq, (c, c), jnp.float32, -bound, bound)
    wk = jax.random.uniform(kk, (c, c), jnp.float32, -bound, bound)

    out = jax.block_until_ready(sc_att_gen_pallas(x, wq, wk))
    ref = jax.block_until_ready(sc_att_gen_reference(x, wq, wk))

    np.testing.assert_allclose(np.asarray(out), np.asarray(ref), rtol=1e-4, atol=1e-5)
    assert out.shape == (n, c * s, c * s)
    print("KERNEL_OK")
</pallas_src>

<mosaic_0001>
module attributes {stable_mosaic.version = 11 : i64} {
  func.func @_sc_att_kernel(%arg0: i32, %arg1: memref<1x32x256xf32, #tpu.memory_space<vmem>>, %arg2: memref<32x64xf32, #tpu.memory_space<vmem>>, %arg3: memref<1x32x32xf32, #tpu.memory_space<vmem>>) attributes {dimension_semantics = [#tpu.dimension_semantics<parallel>], iteration_bounds = array<i64: 2>, scalar_prefetch = 0 : i64, scratch_operands = 0 : i64, tpu.core_type = #tpu.core_type<tc>, window_params = [{transform_indices = @transform_0, window_bounds = array<i64: 1, 32, 256>}, {pipeline_mode = #tpu.pipeline_mode<synchronous>, transform_indices = @transform_1, window_bounds = array<i64: 32, 64>}, {transform_indices = @transform_2, window_bounds = array<i64: 1, 32, 32>}]} {
    %c0 = arith.constant 0 : index
    %c0_0 = arith.constant 0 : index
    %c0_1 = arith.constant 0 : index
    %0 = vector.load %arg1[%c0, %c0_0, %c0_1] : memref<1x32x256xf32, #tpu.memory_space<vmem>>, vector<1x32x256xf32>
    %cst = arith.constant dense<0.000000e+00> : vector<1x32xf32>
    %1 = vector.multi_reduction <add>, %0, %cst [2] : vector<1x32x256xf32> to vector<1x32xf32>
    %cst_2 = arith.constant 2.560000e+02 : f32
    %2 = vector.broadcast %cst_2 : f32 to vector<1x32xf32>
    %3 = arith.divf %1, %2 : vector<1x32xf32>
    %cst_3 = arith.constant dense<0xFF800000> : vector<1x32xf32>
    %4 = vector.multi_reduction <maximumf>, %0, %cst_3 [2] : vector<1x32x256xf32> to vector<1x32xf32>
    %5 = arith.addf %3, %4 : vector<1x32xf32>
    %c0_4 = arith.constant 0 : index
    %c0_5 = arith.constant 0 : index
    %6 = vector.load %arg2[%c0_4, %c0_5] : memref<32x64xf32, #tpu.memory_space<vmem>>, vector<32x64xf32>
    %cst_6 = arith.constant dense<0.000000e+00> : vector<1x64xf32>
    %7 = tpu.matmul %5, %6, %cst_6 {dimension_numbers = #tpu.dot_dimension_numbers<[1], [0], [0], [1], [0, 0, 1, 1], [], []>} : vector<1x32xf32>, vector<32x64xf32>, vector<1x64xf32> -> vector<1x64xf32>
    %8 = vector.extract_strided_slice %7 {offsets = [0, 0], sizes = [1, 32], strides = [1, 1]} : vector<1x64xf32> to vector<1x32xf32>
    %9 = vector.extract_strided_slice %7 {offsets = [0, 32], sizes = [1, 32], strides = [1, 1]} : vector<1x64xf32> to vector<1x32xf32>
    %10 = vector.shape_cast %8 : vector<1x32xf32> to vector<1x32x1xf32>
    %11 = vector.shape_cast %9 : vector<1x32xf32> to vector<1x1x32xf32>
    %12 = vector.broadcast %10 : vector<1x32x1xf32> to vector<1x32x32xf32>
    %13 = vector.broadcast %11 : vector<1x1x32xf32> to vector<1x32x32xf32>
    %14 = arith.mulf %12, %13 : vector<1x32x32xf32>
    %cst_7 = arith.constant dense<0xFF800000> : vector<1x32xf32>
    %15 = vector.multi_reduction <maximumf>, %14, %cst_7 [2] : vector<1x32x32xf32> to vector<1x32xf32>
    %16 = vector.shape_cast %15 : vector<1x32xf32> to vector<1x32x1xf32>
    %17 = vector.broadcast %16 : vector<1x32x1xf32> to vector<1x32x32xf32>
    %18 = arith.subf %14, %17 : vector<1x32x32xf32>
    %19 = math.exp %18 : vector<1x32x32xf32>
    %cst_8 = arith.constant dense<0.000000e+00> : vector<1x32xf32>
    %20 = vector.multi_reduction <add>, %19, %cst_8 [2] : vector<1x32x32xf32> to vector<1x32xf32>
    %21 = vector.shape_cast %20 : vector<1x32xf32> to vector<1x32x1xf32>
    %22 = vector.broadcast %21 : vector<1x32x1xf32> to vector<1x32x32xf32>
    %23 = arith.divf %19, %22 : vector<1x32x32xf32>
    %c0_9 = arith.constant 0 : index
    %c0_10 = arith.constant 0 : index
    %c0_11 = arith.constant 0 : index
    %24 = vector.load %arg3[%c0_9, %c0_10, %c0_11] : memref<1x32x32xf32, #tpu.memory_space<vmem>>, vector<1x32x32xf32>
    tpu.vector_store %arg3[%c0_9, %c0_10, %c0_11], %23 {strides = array<i32>} : memref<1x32x32xf32, #tpu.memory_space<vmem>>, vector<1x32x32xf32>,
    return
  }
  func.func @transform_0(%arg0: i32) -> (i32, i32, i32) {
    %c0_i32 = arith.constant 0 : i32
    %c0_i32_0 = arith.constant 0 : i32
    %c0_i32_1 = arith.constant 0 : i32
    return %arg0, %c0_i32, %c0_i32_0 : i32, i32, i32
  }
  func.func @transform_1(%arg0: i32) -> (i32, i32) {
    %c0_i32 = arith.constant 0 : i32
    %c0_i32_0 = arith.constant 0 : i32
    %c0_i32_1 = arith.constant 0 : i32
    return %c0_i32, %c0_i32_0 : i32, i32
  }
  func.func @transform_2(%arg0: i32) -> (i32, i32, i32) {
    %c0_i32 = arith.constant 0 : i32
    %c0_i32_0 = arith.constant 0 : i32
    %c0_i32_1 = arith.constant 0 : i32
    return %arg0, %c0_i32, %c0_i32_0 : i32, i32, i32
  }
}

</mosaic_0001>

<llo_original>
// kernel: tpu_custom_call.1
$region0: #{tpu_custom_call.1}
  #allocation0 [shape = 'u32[]', space=smem, size = 0x4, offset = 0x4, fixed_abs, tag = 'smem constant byte address 0x4 - core index']
  #allocation1 [shape = 'u32[144,128]{1,0:T(1,128)}', space=vmem, size = 0x12000, scoped, tag = 'internal scratch']
  %s0 = inlined_call_operand.hbm [shape: f32[2,32,256], index: 0, kind: input, shape index: {}]
  %s1 = inlined_call_operand.hbm [shape: f32[32,64], index: 1, kind: input, shape index: {}]
  %s2 = inlined_call_operand.hbm [shape: f32[2,32,32], index: 2, kind: output, shape index: {}]
  %s3 = sld [smem:[#allocation0]]
  $region49: #{tpu_custom_call.1} parent=0
    _
  %s5 = ssub.s32 1, %s3
  %s6 = scalar_select 0, %s5, %s3
  $region1: #{tpu_custom_call.1} parent=0
    #allocation2 [shape = 'u8[65536]{0}', space=vmem, size = 0x10000, scoped, tag = 'input window, operand 0']
    #allocation3 [shape = 's32[2]{0}', space=sflag, size = 0x8, scoped, tag = 'scoped memory for tpu_custom_call.1']
    #allocation4 [shape = 's32[2]{0}', space=sflag, size = 0x8, scoped, tag = 'scoped memory for tpu_custom_call.1']
    #allocation5 [shape = 'u8[16384]{0}', space=vmem, size = 0x4000, scoped, tag = 'input window, operand 1, single buffered']
    #allocation6 [shape = 's32[1]{0}', space=sflag, size = 0x4, scoped, tag = 'scoped memory for tpu_custom_call.1']
    #allocation7 [shape = 'u8[32768]{0}', space=vmem, size = 0x8000, scoped, tag = 'output window, operand 0']
    %7 = vsyncpa [#allocation3], 0
    %s8 = scalar_lea.sflag [#allocation3], 1
    %9 = vsyncpa %s8, 0
    %10 = vsyncpa [#allocation6], 0
    %11 = vsyncpa [#allocation4], 0
    %s12 = scalar_lea.sflag [#allocation4], 1
    %13 = vsyncpa %s12, 0
    loop: start=0, step=1, limit=4
    $region2: #{tpu_custom_call.1} parent=1 // loop_pre_header
      _
    $region3: #{tpu_custom_call.1} parent=1 // loop_header
      %s15 = sphi 0, %s19
      %p16 = scmp.ge.s32.totalorder %s15, 4
      %s25 = sphi 0, %s27
      %s28 = sphi 0, %s25
      %s29 = sphi 0, %s28
      %s45 = sphi 0, %s29
      %s49 = sphi 0, %s49
      %s51 = sphi 0, %s49
      %s52 = sphi 0, %s51
      %s66 = sphi 0, %s52
      %s72 = sphi 0, %s74
      %s75 = sphi 0, %s72
      %s76 = sphi 0, %s75
      %s92 = sphi 0, %s76
    $region4: #{tpu_custom_call.1} parent=1 // loop_header_branch
      %18 = sbr.rel (%p16) target = $region8
    $region5: #{tpu_custom_call.1} parent=1 // loop_body
      %s20 = ssub.s32 %s15, 1
      %s21 = ssub.s32 %s15, 2
      %s22 = sadd.s32 %s15, 1
      %s23 = ssub.s32 %s15, %s22
      %p24 = scmp.eq.s32.totalorder %s23, 0
      %s26 = sadd.s32 %s25, 1
      %s27 = scalar_select %p24, %s25, %s26
      %p30 = pneg %p24
      %p31 = scmp.eq.s32.totalorder %s15, 1
      %p32 = por %p30, %p31
      %p33 = scmp.ne.s32.totalorder %s25, %s28
      %p34 = scmp.eq.s32.totalorder %s15, 0
      %p35 = por %p33, %p34
      %p36 = scmp.ne.s32.totalorder %s25, %s28
      %p37 = scmp.eq.s32.totalorder %s20, 1
      %p38 = por %p36, %p37
      %p39 = scmp.ne.s32.totalorder %s28, %s29
      %p40 = scmp.eq.s32.totalorder %s20, 0
      %p41 = por %p39, %p40
      %p42 = scmp.ne.s32.totalorder %s28, %s29
      %p43 = scmp.eq.s32.totalorder %s21, 1
      %p44 = por %p42, %p43
      %p46 = scmp.ne.s32.totalorder %s29, %s45
      %p47 = scmp.eq.s32.totalorder %s21, 0
      %p48 = por %p46, %p47
      %s50 = sadd.s32 %s49, 1
      %p53 = scmp.eq.s32.totalorder %s15, 1
      %p54 = scmp.ne.s32.totalorder %s49, %s51
      %p55 = scmp.eq.s32.totalorder %s15, 0
      %p56 = por %p54, %p55
      %p57 = scmp.ne.s32.totalorder %s49, %s51
      %p58 = scmp.eq.s32.totalorder %s20, 1
      %p59 = por %p57, %p58
      %p60 = scmp.ne.s32.totalorder %s51, %s52
      %p61 = scmp.eq.s32.totalorder %s20, 0
      %p62 = por %p60, %p61
      %p63 = scmp.ne.s32.totalorder %s51, %s52
      %p64 = scmp.eq.s32.totalorder %s21, 1
      %p65 = por %p63, %p64
      %p67 = scmp.ne.s32.totalorder %s52, %s66
      %p68 = scmp.eq.s32.totalorder %s21, 0
      %p69 = por %p67, %p68
      %s70 = ssub.s32 %s15, %s22
      %p71 = scmp.eq.s32.totalorder %s70, 0
      %s73 = sadd.s32 %s72, 1
      %s74 = scalar_select %p71, %s72, %s73
      %p77 = pneg %p71
      %p78 = scmp.eq.s32.totalorder %s15, 1
      %p79 = por %p77, %p78
      %p80 = scmp.ne.s32.totalorder %s72, %s75
      %p81 = scmp.eq.s32.totalorder %s15, 0
      %p82 = por %p80, %p81
      %p83 = scmp.ne.s32.totalorder %s72, %s75
      %p84 = scmp.eq.s32.totalorder %s20, 1
      %p85 = por %p83, %p84
      %p86 = scmp.ne.s32.totalorder %s75, %s76
      %p87 = scmp.eq.s32.totalorder %s20, 0
      %p88 = por %p86, %p87
      %p89 = scmp.ne.s32.totalorder %s75, %s76
      %p90 = scmp.eq.s32.totalorder %s21, 1
      %p91 = por %p89, %p90
      %p93 = scmp.ne.s32.totalorder %s76, %s92
      %p94 = scmp.eq.s32.totalorder %s21, 0
      %p95 = por %p93, %p94
      %p96 = scmp.le.s32.totalorder 1, %s15
      %p97 = scmp.lt.s32.totalorder %s15, 3
      %p98 = pnand %p96, %p97
      %p99 = pneg %p98
      // Predicated region
      $region9: #{tpu_custom_call.1} parent=5 // pred_check
        _
      $region10: #{tpu_custom_call.1} parent=5 // pred_check_branch
        %101 = sbr.rel (%p98) target = $region12
      $region11: #{tpu_custom_call.1} parent=5 // pred_region
        %s102 = ssub.s32 %s15, 1
        // Predicated region
        $region13: #{tpu_custom_call.1} parent=11 // pred_check
          %p103 = pneg %p62
        $region14: #{tpu_custom_call.1} parent=11 // pred_check_branch
          %105 = sbr.rel (%p103) target = $region16
        $region15: #{tpu_custom_call.1} parent=11 // pred_region
          %s107 = ssub.s32 512, 512
          %108 = vsyncadd [#allocation6], %s107
          %s109 = sshll.u32 [#allocation5], 4
          %s110 = int_to_ptr.vmem [resolvable:$true] %s109
          %115 = dma.hbm_to_vmem [thread:$0]  %s1, 512, %s110, [#allocation6], 128, 128, 8
        $region16: #{tpu_custom_call.1} parent=11 // pred_fallthru
          _
      $region12: #{tpu_custom_call.1} parent=5 // pred_fallthru
        _
      %p116 = scmp.lt.s32.totalorder %s15, 2
      // Predicated region
      $region17: #{tpu_custom_call.1} parent=5 // pred_check
        %p117 = pneg %p116
      $region18: #{tpu_custom_call.1} parent=5 // pred_check_branch
        %119 = sbr.rel (%p117) target = $region20
      $region19: #{tpu_custom_call.1} parent=5 // pred_region
        // Predicated region
        $region21: #{tpu_custom_call.1} parent=19 // pred_check
          %p120 = pneg %p35
        $region22: #{tpu_custom_call.1} parent=19 // pred_check_branch
          %122 = sbr.rel (%p120) target = $region24
        $region23: #{tpu_custom_call.1} parent=19 // pred_region
          %s123 = sand.u32 %s25, 1
          %s124 = scalar_lea.sflag [#allocation3], %s123
          %s125 = sand.u32 %s25, 1
          %s126 = smul.addr %s125, 64
          %s127 = scalar_lea.vmem [#allocation2], %s126
          %s129 = ssub.s32 1024, 1024
          %130 = vsyncadd %s124, %s129
          %s131 = smul.addr %s15, 8
          %s132 = smul.addr %s131, 128
          %s133 = scalar_lea.hbm %s0, %s132
          %s134 = sshll.u32 %s127, 4
          %s135 = int_to_ptr.vmem [resolvable:$true] %s134
          %140 = dma.hbm_to_vmem [thread:$0]  %s133, 1024, %s135, %s124, 256, 256, 16
        $region24: #{tpu_custom_call.1} parent=19 // pred_fallthru
          _
      $region20: #{tpu_custom_call.1} parent=5 // pred_fallthru
        _
      %p141 = scmp.le.s32.totalorder 1, %s15
      %p142 = scmp.lt.s32.totalorder %s15, 3
      %p143 = pnand %p141, %p142
      %p144 = pneg %p143
      // Predicated region
      $region25: #{tpu_custom_call.1} parent=5 // pred_check
        _
      $region26: #{tpu_custom_call.1} parent=5 // pred_check_branch
        %146 = sbr.rel (%p143) target = $region28
      $region27: #{tpu_custom_call.1} parent=5 // pred_region
        %s147 = ssub.s32 %s15, 1
        %s148 = sand.u32 %s28, 1
        %s149 = scalar_lea.sflag [#allocation3], %s148
        %s150 = sand.u32 %s28, 1
        %s151 = smul.addr %s150, 64
        %s152 = scalar_lea.vmem [#allocation2], %s151
        // Predicated region
        $region29: #{tpu_custom_call.1} parent=27 // pred_check
          %p153 = pneg %p41
        $region30: #{tpu_custom_call.1} parent=27 // pred_check_branch
          %155 = sbr.rel (%p153) target = $region32
        $region31: #{tpu_custom_call.1} parent=27 // pred_region
          %156 = dma.done %s149, 1024
        $region32: #{tpu_custom_call.1} parent=27 // pred_fallthru
          _
        // Predicated region
        $region33: #{tpu_custom_call.1} parent=27 // pred_check
          %p157 = pneg %p62
        $region34: #{tpu_custom_call.1} parent=27 // pred_check_branch
          %159 = sbr.rel (%p157) target = $region36
        $region35: #{tpu_custom_call.1} parent=27 // pred_region
          %160 = dma.done [#allocation6], 512
        $region36: #{tpu_custom_call.1} parent=27 // pred_fallthru
          _
        %s161 = sand.u32 %s28, 1
        %s162 = scalar_lea.sflag [#allocation3], %s161
        %s163 = sand.u32 %s28, 1
        %s164 = smul.addr %s163, 64
        %s165 = scalar_lea.vmem [#allocation2], %s164
        %p166 = pneg %p41
        %p167 = pneg %p38
        %p168 = pneg %p62
        %p169 = pneg %p59
        %p170 = pneg %p88
        %p171 = pneg %p85
        %s172 = sand.u32 %s75, 1
        %s173 = scalar_lea.sflag [#allocation4], %s172
        %s174 = sand.u32 %s75, 1
        %s175 = smul.addr %s174, 32
        %s176 = scalar_lea.vmem [#allocation7], %s175
        %v177 = vld [vmem:[%s152] sm:$0xff]
        %v178 = vld [vmem:[%s152 + $0x8] sm:$0xff]
        %v179 = vld [vmem:[%s152 + $0x10] sm:$0xff]
        %v180 = vld [vmem:[%s152 + $0x18] sm:$0xff]
        %v181 = vld [vmem:[%s152 + $0x20] sm:$0xff]
        %v182 = vld [vmem:[%s152 + $0x28] sm:$0xff]
        %v183 = vld [vmem:[%s152 + $0x30] sm:$0xff]
        %v184 = vld [vmem:[%s152 + $0x38] sm:$0xff]
        %v185 = vadd.f32 %v177, %v178
        %186 = vadd.xlane.f32.xlu0 %v185
        %v187 = vpop.xlane.xlu0 %186
        %v188 = vadd.f32 %v179, %v180
        %189 = vadd.xlane.f32.xlu0 %v188
        %v190 = vpop.xlane.xlu0 %189
        %v191 = vadd.f32 %v181, %v182
        %192 = vadd.xlane.f32.xlu0 %v191
        %v193 = vpop.xlane.xlu0 %192
        %v194 = vadd.f32 %v183, %v184
        %195 = vadd.xlane.f32.xlu0 %v194
        %v196 = vpop.xlane.xlu0 %195
        %v197 = vrcp.pop 256.0
        %v198 = vmul.f32 %v187, %v197
        %v199 = vmul.f32 %v190, %v197
        %v200 = vmul.f32 %v193, %v197
        %v201 = vmul.f32 %v196, %v197
        %v202 = vmax.f32 %v177, %v178
        %203 = vmax.xlane.f32.xlu0 %v202
        %v204 = vpop.xlane.xlu0 %203
        %v205 = vmax.f32 %v179, %v180
        %206 = vmax.xlane.f32.xlu0 %v205
        %v207 = vpop.xlane.xlu0 %206
        %v208 = vmax.f32 %v181, %v182
        %209 = vmax.xlane.f32.xlu0 %v208
        %v210 = vpop.xlane.xlu0 %209
        %v211 = vmax.f32 %v183, %v184
        %212 = vmax.xlane.f32.xlu0 %v211
        %v213 = vpop.xlane.xlu0 %212
        %v214 = vadd.f32 %v198, %v204
        %v215 = vadd.f32 %v199, %v207
        %v216 = vadd.f32 %v200, %v210
        %v217 = vadd.f32 %v201, %v213
        %v218 = vld [vmem:[#allocation5] sm:$0xff]
        %v219 = vld [vmem:[#allocation5 + $0x8] sm:$0xff]
        %v220 = vld [vmem:[#allocation5 + $0x10] sm:$0xff]
        %v221 = vld [vmem:[#allocation5 + $0x18] sm:$0xff]
        %v226 = vlaneseq
        %v227 = vand.u32 %v226, 127
        %v228 = vlaneseq
        %v229 = vshrl.u32 %v228, 7
        %v230 = vsub.s32 %v227, %v229
        %v231 = vrot.slane %v214, %v230
        %v232 = vadd.s32 %v227, 4294967288
        %v233 = vlaneseq
        %v234 = vshrl.u32 %v233, 7
        %v235 = vsub.s32 %v232, %v234
        %v236 = vrot.slane %v215, %v235
        %vm237 = vcmask 130112
        %v238 = vsel %vm237, %v236, %v231
        %v239 = vadd.s32 %v227, 4294967280
        %v240 = vlaneseq
        %v241 = vshrl.u32 %v240, 7
        %v242 = vsub.s32 %v239, %v241
        %v243 = vrot.slane %v216, %v242
        %vm244 = vcmask 195712
        %v245 = vsel %vm244, %v243, %v238
        %v246 = vadd.s32 %v227, 4294967272
        %v247 = vlaneseq
        %v248 = vshrl.u32 %v247, 7
        %v249 = vsub.s32 %v246, %v248
        %v250 = vrot.slane %v217, %v249
        %vm251 = vcmask 261312
        %v252 = vsel %vm251, %v250, %v245
        %vm253 = vcmask 261120
        %v254 = vsel %vm253, %v252, 0
        %256 = vmatprep.subr.mxu0 0.0
        %257 = vmatpush1.msra.mxu0 %v218
        %258 = vmatprep.subr.mxu0 0.0
        %259 = vmatpush1.msra.mxu0 %v219
        %260 = vmatprep.subr.mxu0 0.0
        %261 = vmatpush1.msra.mxu0 %v220
        %262 = vmatprep.subr.mxu0 0.0
        %263 = vmatpush1.msra.mxu0 %v221
        %264 = vmatprep.subr.mxu0 0.0
        %265 = vmatpush1.msra.mxu0 0.0
        %266 = vmatprep.subr.mxu0 0.0
        %267 = vmatpush1.msra.mxu0 0.0
        %268 = vmatprep.subr.mxu0 0.0
        %269 = vmatpush1.msra.mxu0 0.0
        %270 = vmatprep.subr.mxu0 0.0
        %271 = vmatpush1.msra.mxu0 0.0
        %272 = vmatprep.subr.mxu0 0.0
        %273 = vmatpush1.msra.mxu0 0.0
        %274 = vmatprep.subr.mxu0 0.0
        %275 = vmatpush1.msra.mxu0 0.0
        %276 = vmatprep.subr.mxu0 0.0
        %277 = vmatpush1.msra.mxu0 0.0
        %278 = vmatprep.subr.mxu0 0.0
        %279 = vmatpush1.msra.mxu0 0.0
        %280 = vmatprep.subr.mxu0 0.0
        %281 = vmatpush1.msra.mxu0 0.0
        %282 = vmatprep.subr.mxu0 0.0
        %283 = vmatpush1.msra.mxu0 0.0
        %284 = vmatprep.subr.mxu0 0.0
        %285 = vmatpush1.msra.mxu0 0.0
        %286 = vmatprep.subr.mxu0 0.0
        %287 = vmatpush1.msra.mxu0 0.0
        %288 = vmatprep.subr.mxu0 0.0
        %289 = vmatpush1.msra.mxu0 0.0
        %290 = vmatprep.subr.mxu0 0.0
        %291 = vmatpush1.msra.mxu0 0.0
        %292 = vmatprep.subr.mxu0 0.0
        %293 = vmatpush1.msra.mxu0 0.0
        %294 = vmatprep.subr.mxu0 0.0
        %295 = vmatpush1.msra.mxu0 0.0
        %296 = vmatprep.subr.mxu0 0.0
        %297 = vmatpush1.msra.mxu0 0.0
        %298 = vmatprep.subr.mxu0 0.0
        %299 = vmatpush1.msra.mxu0 0.0
        %300 = vmatprep.subr.mxu0 0.0
        %301 = vmatpush1.msra.mxu0 0.0
        %302 = vmatprep.subr.mxu0 0.0
        %303 = vmatpush1.msra.mxu0 0.0
        %304 = vmatprep.subr.mxu0 0.0
        %305 = vmatpush1.msra.mxu0 0.0
        %306 = vmatprep.subr.mxu0 0.0
        %307 = vmatpush1.msra.mxu0 0.0
        %308 = vmatprep.subr.mxu0 0.0
        %309 = vmatpush1.msra.mxu0 0.0
        %310 = vmatprep.subr.mxu0 0.0
        %311 = vmatpush1.msra.mxu0 0.0
        %312 = vmatprep.subr.mxu0 0.0
        %313 = vmatpush1.msra.mxu0 0.0
        %314 = vmatprep.subr.mxu0 0.0
        %315 = vmatpush1.msra.mxu0 0.0
        %316 = vmatprep.subr.mxu0 0.0
        %317 = vmatpush1.msra.mxu0 0.0
        %318 = vmatprep.subr.mxu0 0.0
        %319 = vmatpush1.msra.mxu0 0.0
        %320 = vmatprep.mubr.f32.mxu0 0.0
        %321 = vmatmul.mubr.f32.gmra.mrb[0].mxu0 %v254
        %v322 = vpop.f32.mrb[0].mxu0
        %v323 = vadd.f32 0.0, %v322
        %v324 = vpop.f32.mrb[0].mxu0
        %325 = vdwg.mxu0
        %v326 = vlaneseq
        %v327 = vshrl.u32 %v326, 7
        %v328 = vsub.s32 0, %v327
        %v329 = vrot.slane %v323, %v328
        %331 = vbcast.lane.b32.xlu0 %v329, 256
        %v332 = vpop.permute.xlu0 %331
        %s334 = sor.u32 256, 8
        %335 = vbcast.lane.b32.xlu0 %v329, %s334
        %v336 = vpop.permute.xlu0 %335
        %s338 = sor.u32 256, 16
        %339 = vbcast.lane.b32.xlu0 %v329, %s338
        %v340 = vpop.permute.xlu0 %339
        %s342 = sor.u32 256, 24
        %343 = vbcast.lane.b32.xlu0 %v329, %s342
        %v344 = vpop.permute.xlu0 %343
        %v345 = vmul.f32 %v332, %v329
        %v346 = vmul.f32 %v336, %v329
        %v347 = vmul.f32 %v340, %v329
        %v348 = vmul.f32 %v344, %v329
        %vm349 = vcmask 523520
        %v350 = vsel %vm349, %v345, -inf
        %351 = vmax.xlane.f32.xlu0 %v350
        %v352 = vpop.xlane.xlu0 %351
        %v353 = vsel %vm349, %v346, -inf
        %354 = vmax.xlane.f32.xlu0 %v353
        %v355 = vpop.xlane.xlu0 %354
        %v356 = vsel %vm349, %v347, -inf
        %357 = vmax.xlane.f32.xlu0 %v356
        %v358 = vpop.xlane.xlu0 %357
        %v359 = vsel %vm349, %v348, -inf
        %360 = vmax.xlane.f32.xlu0 %v359
        %v361 = vpop.xlane.xlu0 %360
        %v362 = vsub.f32 %v345, %v352
        %v363 = vsub.f32 %v346, %v355
        %v364 = vsub.f32 %v347, %v358
        %v365 = vsub.f32 %v348, %v361
        %v366 = vmul.f32 %v362, 1.442695
        %v367 = vpow.pop %v366
        %v368 = vmul.f32 %v363, 1.442695
        %v369 = vpow.pop %v368
        %v370 = vmul.f32 %v364, 1.442695
        %v371 = vpow.pop %v370
        %v372 = vmul.f32 %v365, 1.442695
        %v373 = vpow.pop %v372
        %378 = vrot.lane.b32.xlu0 %v367, 96
        %v379 = vpop.permute.xlu0 %378
        %380 = vrot.lane.b32.xlu0 %v369, 96
        %v381 = vpop.permute.xlu0 %380
        %382 = vrot.lane.b32.xlu0 %v371, 96
        %v383 = vpop.permute.xlu0 %382
        %384 = vrot.lane.b32.xlu0 %v373, 96
        %v385 = vpop.permute.xlu0 %384
        %v390 = vsel %vm253, %v379, 0.0
        %391 = vadd.xlane.f32.xlu0 %v390
        %v392 = vpop.xlane.xlu0 %391
        %v393 = vsel %vm253, %v381, 0.0
        %394 = vadd.xlane.f32.xlu0 %v393
        %v395 = vpop.xlane.xlu0 %394
        %v396 = vsel %vm253, %v383, 0.0
        %397 = vadd.xlane.f32.xlu0 %v396
        %v398 = vpop.xlane.xlu0 %397
        %v399 = vsel %vm253, %v385, 0.0
        %400 = vadd.xlane.f32.xlu0 %v399
        %v401 = vpop.xlane.xlu0 %400
        %v402 = vrcp.pop %v392
        %v403 = vmul.f32 %v367, %v402
        %v404 = vrcp.pop %v395
        %v405 = vmul.f32 %v369, %v404
        %v406 = vrcp.pop %v398
        %v407 = vmul.f32 %v371, %v406
        %v408 = vrcp.pop %v401
        %v409 = vmul.f32 %v373, %v408
        %414 = vrot.lane.b32.xlu0 %v403, 96
        %v415 = vpop.permute.xlu0 %414
        %416 = vrot.lane.b32.xlu0 %v405, 96
        %v417 = vpop.permute.xlu0 %416
        %418 = vrot.lane.b32.xlu0 %v407, 96
        %v419 = vpop.permute.xlu0 %418
        %420 = vrot.lane.b32.xlu0 %v409, 96
        %v421 = vpop.permute.xlu0 %420
        %426 = vst.msk [vmem:[%s176] sm:$0xff] %vm253, %v415
        %427 = vst.msk [vmem:[%s176 + $0x8] sm:$0xff] %vm253, %v417
        %428 = vst.msk [vmem:[%s176 + $0x10] sm:$0xff] %vm253, %v419
        %429 = vst.msk [vmem:[%s176 + $0x18] sm:$0xff] %vm253, %v421
        %s430 = sand.u32 %s75, 1
        %s431 = scalar_lea.sflag [#allocation4], %s430
        %s432 = sand.u32 %s75, 1
        %s433 = smul.addr %s432, 32
        %s434 = scalar_lea.vmem [#allocation7], %s433
        // Predicated region
        $region37: #{tpu_custom_call.1} parent=27 // pred_check
          %p435 = pneg %p85
        $region38: #{tpu_custom_call.1} parent=27 // pred_check_branch
          %437 = sbr.rel (%p435) target = $region40
        $region39: #{tpu_custom_call.1} parent=27 // pred_region
          %s439 = ssub.s32 512, 512
          %440 = vsyncadd %s431, %s439
          %s441 = smul.addr %s20, 4
          %s442 = smul.addr %s441, 128
          %s443 = scalar_lea.hbm %s2, %s442
          %s444 = sshll.u32 %s434, 4
          %s445 = int_to_ptr.vmem [resolvable:$true] %s444
          %450 = dma.vmem_to_hbm [thread:$0]  %s445, 512, %s443, %s431, 128, 128, 8
        $region40: #{tpu_custom_call.1} parent=27 // pred_fallthru
          _
      $region28: #{tpu_custom_call.1} parent=5 // pred_fallthru
        _
      %p451 = scmp.le.s32.totalorder 2, %s15
      // Predicated region
      $region41: #{tpu_custom_call.1} parent=5 // pred_check
        %p452 = pneg %p451
      $region42: #{tpu_custom_call.1} parent=5 // pred_check_branch
        %454 = sbr.rel (%p452) target = $region44
      $region43: #{tpu_custom_call.1} parent=5 // pred_region
        %s455 = ssub.s32 %s15, 2
        // Predicated region
        $region45: #{tpu_custom_call.1} parent=43 // pred_check
          %p456 = pneg %p91
        $region46: #{tpu_custom_call.1} parent=43 // pred_check_branch
          %458 = sbr.rel (%p456) target = $region48
        $region47: #{tpu_custom_call.1} parent=43 // pred_region
          %s459 = sand.u32 %s76, 1
          %s460 = scalar_lea.sflag [#allocation4], %s459
          %s461 = sand.u32 %s76, 1
          %s462 = smul.addr %s461, 32
          %s463 = scalar_lea.vmem [#allocation7], %s462
          %464 = dma.done %s460, 512
        $region48: #{tpu_custom_call.1} parent=43 // pred_fallthru
          _
      $region44: #{tpu_custom_call.1} parent=5 // pred_fallthru
        _
    $region6: #{tpu_custom_call.1} parent=1 // loop_footer
      %s19 = sadd.s32 1, %s15
    $region7: #{tpu_custom_call.1} parent=1 // loop_footer_branch
      %14 = sbr.rel target = $region3
    $region8: #{tpu_custom_call.1} parent=1 // loop_exit
      _
    %465 = vsyncpa [#allocation3], 1
    %s466 = scalar_lea.sflag [#allocation3], 1
    %467 = vsyncpa %s466, 1
    %468 = vsyncpa [#allocation6], 1
    %469 = vsyncpa [#allocation4], 1
    %s470 = scalar_lea.sflag [#allocation4], 1
    %471 = vsyncpa %s470, 1

</llo_original>
